<compile_context>
chip_gen: v7x
topology: tpu7x:2x2x1
jax: 0.10.0
libtpu: 0.0.40
codegen_flags: <defaults>
</compile_context>

<pallas_src>
import jax
import jax.numpy as jnp
from jax.experimental import pallas as pl
from jax.experimental.pallas import tpu as pltpu


# ---------------------------------------------------------------------------
# Generation-aware configuration helpers
# ---------------------------------------------------------------------------
def _device_kind() -> str:
    try:
        return jax.devices()[0].device_kind.lower()
    except Exception:
        return ""


def _supports_int8_mxu() -> bool:
    # v5e/v5p/v6e MXUs have a native int8 path; v7x dropped it (fp8 only).
    kind = _device_kind()
    return ("v5" in kind) or ("v6" in kind)


def _vmem_limit_bytes() -> int:
    # Leave headroom: v5e/v6e have 128 MiB physical VMEM, v7x only 64 MiB / TC.
    try:
        cap = pltpu.get_tpu_info().vmem_capacity_bytes
    except Exception:
        cap = 128 * 1024 * 1024
    return int(min(64 * 1024 * 1024, (cap * 3) // 4))


# ---------------------------------------------------------------------------
# Kernels
# ---------------------------------------------------------------------------
def _mlp_kernel_i8(x_ref, xs_ref, wg_ref, sg_ref, wu_ref, su_ref, wd_ref,
                   sd_ref, o_ref):
    """int8 x int8 MXU path (v5e / v6e).

    x_ref  : (TM, H)  int8 activations (per-token quantized in the wrapper)
    xs_ref : (TM, 1)  f32 per-token activation scales
    wg/wu  : (H, TI)  int8, sg/su: (1, TI) f32 per-out-channel weight scales
    wd     : (TI, H)  int8, sd    : (1, H) f32
    o_ref  : (TM, H)  f32 output block, revisited across j (acts as accumulator)
    """
    j = pl.program_id(1)

    @pl.when(j == 0)
    def _():
        o_ref[...] = jnp.zeros_like(o_ref)

    x_i8 = x_ref[...]
    xs = xs_ref[...]

    # int8 x int8 -> int32 on the MXU; dequant folded into the f32 result.
    g = jnp.dot(x_i8, wg_ref[...],
                preferred_element_type=jnp.int32).astype(jnp.float32) * xs * sg_ref[...]
    u = jnp.dot(x_i8, wu_ref[...],
                preferred_element_type=jnp.int32).astype(jnp.float32) * xs * su_ref[...]

    # SiLU(gate) * up for this I-slice.
    h = g * jax.nn.sigmoid(g) * u                       # (TM, TI) f32

    # Dynamic per-row int8 quantization of the down_proj input (LLM.int8() style).
    habs = jnp.max(jnp.abs(h), axis=-1, keepdims=True)
    hs = jnp.where(habs > 0.0, habs / 127.0, 1.0)
    h_i8 = jnp.clip(jnp.round(h / hs), -127.0, 127.0).astype(jnp.int8)

    o_ref[...] += jnp.dot(h_i8, wd_ref[...],
                          preferred_element_type=jnp.int32).astype(jnp.float32) * hs

    @pl.when(j == pl.num_programs(1) - 1)
    def _():
        o_ref[...] *= sd_ref[...]


def _mlp_kernel_bf16(x_ref, wg_ref, sg_ref, wu_ref, su_ref, wd_ref, sd_ref,
                     o_ref):
    """bf16 fallback path (v7x / generations without an int MXU).

    x_ref is pre-cast to bf16 in the wrapper (hoisted activation cast).
    """
    j = pl.program_id(1)

    @pl.when(j == 0)
    def _():
        o_ref[...] = jnp.zeros_like(o_ref)

    x = x_ref[...]                                      # bf16
    g = jnp.dot(x, wg_ref[...].astype(jnp.bfloat16),
                preferred_element_type=jnp.float32) * sg_ref[...]
    u = jnp.dot(x, wu_ref[...].astype(jnp.bfloat16),
                preferred_element_type=jnp.float32) * su_ref[...]
    h = (g * jax.nn.sigmoid(g) * u).astype(jnp.bfloat16)
    o_ref[...] += jnp.dot(h, wd_ref[...].astype(jnp.bfloat16),
                          preferred_element_type=jnp.float32)

    @pl.when(j == pl.num_programs(1) - 1)
    def _():
        o_ref[...] *= sd_ref[...]


# ---------------------------------------------------------------------------
# Wrapper
# ---------------------------------------------------------------------------
def _quantize_rows(x):
    """Dynamic symmetric per-row int8 quantization (abs-max / 127)."""
    absmax = jnp.max(jnp.abs(x), axis=-1, keepdims=True)
    scale = jnp.where(absmax > 0.0, absmax / 127.0, 1.0).astype(jnp.float32)
    q = jnp.clip(jnp.round(x / scale), -127.0, 127.0).astype(jnp.int8)
    return q, scale


def quant_deepseek_mlp(x, wg_q, sg, wu_q, su, wd_q, sd, *, tm=256, ti=512,
                       use_int8_mxu=None):
    """x: (M, H) float32.  Weights int8 stored as (in, out), scales (1, out) f32.

    Returns (M, H) float32.
    """
    M, H = x.shape
    I = wg_q.shape[1]

    if use_int8_mxu is None:
        use_int8_mxu = _supports_int8_mxu()

    # Token tile: multiple of 32 (covers int8/bf16 sublane packing), capped at tm.
    tm_eff = min(max(32, (tm // 32) * 32), pl.cdiv(M, 32) * 32)
    M_pad = pl.cdiv(M, tm_eff) * tm_eff

    # Intermediate (reduction) tile.
    ti_eff = min(ti, I)
    assert I % ti_eff == 0, "intermediate_size must be divisible by the I tile"
    assert ti_eff == I or ti_eff % 128 == 0

    grid = (M_pad // tm_eff, I // ti_eff)

    compiler_params = pltpu.CompilerParams(
        dimension_semantics=("parallel", "arbitrary"),
        vmem_limit_bytes=_vmem_limit_bytes(),
    )
    out_shape = jax.ShapeDtypeStruct((M_pad, H), jnp.float32)

    w_specs = [
        pl.BlockSpec((H, ti_eff), lambda i, j: (0, j)),   # gate W int8 slice
        pl.BlockSpec((1, ti_eff), lambda i, j: (0, j)),   # gate scale slice
        pl.BlockSpec((H, ti_eff), lambda i, j: (0, j)),   # up W int8 slice
        pl.BlockSpec((1, ti_eff), lambda i, j: (0, j)),   # up scale slice
        pl.BlockSpec((ti_eff, H), lambda i, j: (j, 0)),   # down W int8 slice
        pl.BlockSpec((1, H), lambda i, j: (0, 0)),        # down scale
    ]
    out_spec = pl.BlockSpec((tm_eff, H), lambda i, j: (i, 0))

    if use_int8_mxu:
        # Dynamic per-token activation quantization done once in the wrapper
        # (quarters the x HBM read and removes per-step casts entirely).
        x_q, xs = _quantize_rows(x)
        if M_pad != M:
            x_q = jnp.pad(x_q, ((0, M_pad - M), (0, 0)))
            xs = jnp.pad(xs, ((0, M_pad - M), (0, 0)))
        in_specs = [
            pl.BlockSpec((tm_eff, H), lambda i, j: (i, 0)),   # x int8 tile
            pl.BlockSpec((tm_eff, 1), lambda i, j: (i, 0)),   # x per-row scale
        ] + w_specs
        out = pl.pallas_call(
            _mlp_kernel_i8,
            out_shape=out_shape,
            grid_spec=pltpu.PrefetchScalarGridSpec(
                num_scalar_prefetch=0, grid=grid,
                in_specs=in_specs, out_specs=out_spec),
            compiler_params=compiler_params,
        )(x_q, xs, wg_q, sg, wu_q, su, wd_q, sd)
    else:
        # Hoisted activation cast: x enters the kernel already bf16.
        xb = x.astype(jnp.bfloat16)
        if M_pad != M:
            xb = jnp.pad(xb, ((0, M_pad - M), (0, 0)))
        in_specs = [pl.BlockSpec((tm_eff, H), lambda i, j: (i, 0))] + w_specs
        out = pl.pallas_call(
            _mlp_kernel_bf16,
            out_shape=out_shape,
            grid_spec=pltpu.PrefetchScalarGridSpec(
                num_scalar_prefetch=0, grid=grid,
                in_specs=in_specs, out_specs=out_spec),
            compiler_params=compiler_params,
        )(xb, wg_q, sg, wu_q, su, wd_q, sd)

    return out[:M]


# ---------------------------------------------------------------------------
# Test helpers (weight quantization + references mirroring each kernel path)
# ---------------------------------------------------------------------------
def _quantize_per_out_channel(w_in_out):
    """w_in_out: (in, out) float32 -> (int8 weights, (1, out) f32 scales)."""
    absmax = jnp.max(jnp.abs(w_in_out), axis=0, keepdims=True)
    scale = jnp.where(absmax == 0.0, 1.0, absmax / 127.0)
    w_q = jnp.clip(jnp.round(w_in_out / scale), -127, 127).astype(jnp.int8)
    return w_q, scale.astype(jnp.float32)


def _reference_int8(x, wg_q, sg, wu_q, su, wd_q, sd, ti):
    x_q, xs = _quantize_rows(x)
    g = jnp.dot(x_q.astype(jnp.int32),
                wg_q.astype(jnp.int32)).astype(jnp.float32) * xs * sg
    u = jnp.dot(x_q.astype(jnp.int32),
                wu_q.astype(jnp.int32)).astype(jnp.float32) * xs * su
    h = g * jax.nn.sigmoid(g) * u
    I = wg_q.shape[1]
    acc = jnp.zeros((x.shape[0], wd_q.shape[1]), jnp.float32)
    for s in range(0, I, ti):
        hq, hs = _quantize_rows(h[:, s:s + ti])
        acc = acc + jnp.dot(hq.astype(jnp.int32),
                            wd_q[s:s + ti].astype(jnp.int32)).astype(jnp.float32) * hs
    return acc * sd


def _reference_bf16(x, wg_q, sg, wu_q, su, wd_q, sd):
    xb = x.astype(jnp.bfloat16)
    g = jnp.dot(xb, wg_q.astype(jnp.bfloat16),
                preferred_element_type=jnp.float32) * sg
    u = jnp.dot(xb, wu_q.astype(jnp.bfloat16),
                preferred_element_type=jnp.float32) * su
    h = (jax.nn.silu(g) * u).astype(jnp.bfloat16)
    return jnp.dot(h, wd_q.astype(jnp.bfloat16),
                   preferred_element_type=jnp.float32) * sd


if __name__ == "__main__":
    # Small config consistent with the module: hidden_size=256, intermediate_size=512,
    # hidden_act="silu".  Tokens: batch=2, seq=8 -> M=16 (exercises the M-padding path).
    B, S = 2, 8
    H, I = 256, 512
    M = B * S
    TI = 256  # 2 reduction steps over I -> exercises the in-place output accumulation

    key = jax.random.PRNGKey(0)
    kx, kg, ku, kd = jax.random.split(key, 4)

    x = jax.random.normal(kx, (B, S, H), dtype=jnp.float32)
    wg = jax.random.normal(kg, (H, I), dtype=jnp.float32) * 0.05
    wu = jax.random.normal(ku, (H, I), dtype=jnp.float32) * 0.05
    wd = jax.random.normal(kd, (I, H), dtype=jnp.float32) * 0.05

    wg_q, sg = _quantize_per_out_channel(wg)
    wu_q, su = _quantize_per_out_channel(wu)
    wd_q, sd = _quantize_per_out_channel(wd)

    x2d = x.reshape(M, H)

    def run(use_int8):
        out = quant_deepseek_mlp(x2d, wg_q, sg, wu_q, su, wd_q, sd,
                                 ti=TI, use_int8_mxu=use_int8)
        out = jax.block_until_ready(out)
        if use_int8:
            ref = _reference_int8(x2d, wg_q, sg, wu_q, su, wd_q, sd, TI)
            tol = 2e-2   # allows rare quantization bin flips from ulp-level diffs
        else:
            ref = _reference_bf16(x2d, wg_q, sg, wu_q, su, wd_q, sd)
            tol = 2e-3
        return out, ref, tol

    use_int8 = _supports_int8_mxu()
    try:
        out, ref, tol = run(use_int8)
    except Exception:
        if not use_int8:
            raise
        # Capability guard: if the int8 MXU path is unavailable on this chip,
        # fall back to the portable bf16 path.
        out, ref, tol = run(False)

    out = out.reshape(B, S, H)
    ref = jnp.asarray(ref).reshape(B, S, H)
    assert jnp.allclose(out, ref, atol=tol, rtol=tol), "mismatch vs reference"

    print("KERNEL_OK")
</pallas_src>

<mosaic_0001>
module attributes {stable_mosaic.version = 11 : i64} {
  func.func @_mlp_kernel_bf16(%arg0: i32, %arg1: i32, %arg2: memref<32x256xbf16, #tpu.memory_space<vmem>>, %arg3: memref<256x256xi8, #tpu.memory_space<vmem>>, %arg4: memref<1x256xf32, #tpu.memory_space<vmem>>, %arg5: memref<256x256xi8, #tpu.memory_space<vmem>>, %arg6: memref<1x256xf32, #tpu.memory_space<vmem>>, %arg7: memref<256x256xi8, #tpu.memory_space<vmem>>, %arg8: memref<1x256xf32, #tpu.memory_space<vmem>>, %arg9: memref<32x256xf32, #tpu.memory_space<vmem>>) attributes {dimension_semantics = [#tpu.dimension_semantics<parallel>, #tpu.dimension_semantics<arbitrary>], iteration_bounds = array<i64: 1, 2>, scalar_prefetch = 0 : i64, scratch_operands = 0 : i64, tpu.core_type = #tpu.core_type<tc>, window_params = [{transform_indices = @transform_0, window_bounds = array<i64: 32, 256>}, {transform_indices = @transform_1, window_bounds = array<i64: 256, 256>}, {transform_indices = @transform_2, window_bounds = array<i64: 1, 256>}, {transform_indices = @transform_3, window_bounds = array<i64: 256, 256>}, {transform_indices = @transform_4, window_bounds = array<i64: 1, 256>}, {transform_indices = @transform_5, window_bounds = array<i64: 256, 256>}, {pipeline_mode = #tpu.pipeline_mode<synchronous>, transform_indices = @transform_6, window_bounds = array<i64: 1, 256>}, {transform_indices = @transform_7, window_bounds = array<i64: 32, 256>}]} {
    %c0_i32 = arith.constant 0 : i32
    %0 = arith.cmpi eq, %arg1, %c0_i32 : i32
    %1 = arith.extui %0 : i1 to i32
    %c0_i32_0 = arith.constant 0 : i32
    %2 = arith.cmpi ne, %1, %c0_i32_0 : i32
    scf.if %2 {
      %cst_20 = arith.constant 0.000000e+00 : f32
      %33 = vector.broadcast %cst_20 : f32 to vector<32x256xf32>
      %c0_21 = arith.constant 0 : index
      %c0_22 = arith.constant 0 : index
      %34 = vector.load %arg9[%c0_21, %c0_22] : memref<32x256xf32, #tpu.memory_space<vmem>>, vector<32x256xf32>
      tpu.vector_store %arg9[%c0_21, %c0_22], %33 {strides = array<i32>} : memref<32x256xf32, #tpu.memory_space<vmem>>, vector<32x256xf32>,
    } else {
    }
    %c0 = arith.constant 0 : index
    %c0_1 = arith.constant 0 : index
    %3 = vector.load %arg2[%c0, %c0_1] : memref<32x256xbf16, #tpu.memory_space<vmem>>, vector<32x256xbf16>
    %c0_2 = arith.constant 0 : index
    %c0_3 = arith.constant 0 : index
    %4 = vector.load %arg3[%c0_2, %c0_3] : memref<256x256xi8, #tpu.memory_space<vmem>>, vector<256x256xi8>
    %5 = arith.sitofp %4 : vector<256x256xi8> to vector<256x256xbf16>
    %cst = arith.constant dense<0.000000e+00> : vector<32x256xf32>
    %6 = tpu.matmul %3, %5, %cst {dimension_numbers = #tpu.dot_dimension_numbers<[1], [0], [0], [1], [0, 0, 1, 1], [], []>} : vector<32x256xbf16>, vector<256x256xbf16>, vector<32x256xf32> -> vector<32x256xf32>
    %c0_4 = arith.constant 0 : index
    %c0_5 = arith.constant 0 : index
    %7 = vector.load %arg4[%c0_4, %c0_5] : memref<1x256xf32, #tpu.memory_space<vmem>>, vector<1x256xf32>
    %8 = vector.broadcast %7 : vector<1x256xf32> to vector<32x256xf32>
    %9 = arith.mulf %6, %8 : vector<32x256xf32>
    %c0_6 = arith.constant 0 : index
    %c0_7 = arith.constant 0 : index
    %10 = vector.load %arg5[%c0_6, %c0_7] : memref<256x256xi8, #tpu.memory_space<vmem>>, vector<256x256xi8>
    %11 = arith.sitofp %10 : vector<256x256xi8> to vector<256x256xbf16>
    %cst_8 = arith.constant dense<0.000000e+00> : vector<32x256xf32>
    %12 = tpu.matmul %3, %11, %cst_8 {dimension_numbers = #tpu.dot_dimension_numbers<[1], [0], [0], [1], [0, 0, 1, 1], [], []>} : vector<32x256xbf16>, vector<256x256xbf16>, vector<32x256xf32> -> vector<32x256xf32>
    %c0_9 = arith.constant 0 : index
    %c0_10 = arith.constant 0 : index
    %13 = vector.load %arg6[%c0_9, %c0_10] : memref<1x256xf32, #tpu.memory_space<vmem>>, vector<1x256xf32>
    %14 = vector.broadcast %13 : vector<1x256xf32> to vector<32x256xf32>
    %15 = arith.mulf %12, %14 : vector<32x256xf32>
    %16 = arith.negf %9 : vector<32x256xf32>
    %17 = math.exp %16 : vector<32x256xf32>
    %cst_11 = arith.constant 1.000000e+00 : f32
    %18 = vector.broadcast %cst_11 : f32 to vector<32x256xf32>
    %19 = arith.addf %18, %17 : vector<32x256xf32>
    %20 = arith.divf %18, %19 : vector<32x256xf32>
    %21 = arith.mulf %9, %20 : vector<32x256xf32>
    %22 = arith.mulf %21, %15 : vector<32x256xf32>
    %23 = arith.truncf %22 : vector<32x256xf32> to vector<32x256xbf16>
    %c0_12 = arith.constant 0 : index
    %c0_13 = arith.constant 0 : index
    %24 = vector.load %arg9[%c0_12, %c0_13] : memref<32x256xf32, #tpu.memory_space<vmem>>, vector<32x256xf32>
    %c0_14 = arith.constant 0 : index
    %c0_15 = arith.constant 0 : index
    %25 = vector.load %arg7[%c0_14, %c0_15] : memref<256x256xi8, #tpu.memory_space<vmem>>, vector<256x256xi8>
    %26 = arith.sitofp %25 : vector<256x256xi8> to vector<256x256xbf16>
    %cst_16 = arith.constant dense<0.000000e+00> : vector<32x256xf32>
    %27 = tpu.matmul %23, %26, %cst_16 {dimension_numbers = #tpu.dot_dimension_numbers<[1], [0], [0], [1], [0, 0, 1, 1], [], []>} : vector<32x256xbf16>, vector<256x256xbf16>, vector<32x256xf32> -> vector<32x256xf32>
    %28 = arith.addf %24, %27 : vector<32x256xf32>
    %c0_17 = arith.constant 0 : index
    %c0_18 = arith.constant 0 : index
    %29 = vector.load %arg9[%c0_17, %c0_18] : memref<32x256xf32, #tpu.memory_space<vmem>>, vector<32x256xf32>
    tpu.vector_store %arg9[%c0_17, %c0_18], %28 {strides = array<i32>} : memref<32x256xf32, #tpu.memory_space<vmem>>, vector<32x256xf32>,
    %c1_i32 = arith.constant 1 : i32
    %30 = arith.cmpi eq, %arg1, %c1_i32 : i32
    %31 = arith.extui %30 : i1 to i32
    %c0_i32_19 = arith.constant 0 : i32
    %32 = arith.cmpi ne, %31, %c0_i32_19 : i32
    scf.if %32 {
      %c0_20 = arith.constant 0 : index
      %c0_21 = arith.constant 0 : index
      %33 = vector.load %arg9[%c0_20, %c0_21] : memref<32x256xf32, #tpu.memory_space<vmem>>, vector<32x256xf32>
      %c0_22 = arith.constant 0 : index
      %c0_23 = arith.constant 0 : index
      %34 = vector.load %arg8[%c0_22, %c0_23] : memref<1x256xf32, #tpu.memory_space<vmem>>, vector<1x256xf32>
      %35 = vector.broadcast %34 : vector<1x256xf32> to vector<32x256xf32>
      %36 = arith.mulf %33, %35 : vector<32x256xf32>
      %c0_24 = arith.constant 0 : index
      %c0_25 = arith.constant 0 : index
      %37 = vector.load %arg9[%c0_24, %c0_25] : memref<32x256xf32, #tpu.memory_space<vmem>>, vector<32x256xf32>
      tpu.vector_store %arg9[%c0_24, %c0_25], %36 {strides = array<i32>} : memref<32x256xf32, #tpu.memory_space<vmem>>, vector<32x256xf32>,
    } else {
    }
    return
  }
  func.func @transform_0(%arg0: i32, %arg1: i32) -> (i32, i32) {
    %c0_i32 = arith.constant 0 : i32
    %c0_i32_0 = arith.constant 0 : i32
    return %arg0, %c0_i32 : i32, i32
  }
  func.func @transform_1(%arg0: i32, %arg1: i32) -> (i32, i32) {
    %c0_i32 = arith.constant 0 : i32
    %c0_i32_0 = arith.constant 0 : i32
    return %c0_i32, %arg1 : i32, i32
  }
  func.func @transform_2(%arg0: i32, %arg1: i32) -> (i32, i32) {
    %c0_i32 = arith.constant 0 : i32
    %c0_i32_0 = arith.constant 0 : i32
    return %c0_i32, %arg1 : i32, i32
  }
  func.func @transform_3(%arg0: i32, %arg1: i32) -> (i32, i32) {
    %c0_i32 = arith.constant 0 : i32
    %c0_i32_0 = arith.constant 0 : i32
    return %c0_i32, %arg1 : i32, i32
  }
  func.func @transform_4(%arg0: i32, %arg1: i32) -> (i32, i32) {
    %c0_i32 = arith.constant 0 : i32
    %c0_i32_0 = arith.constant 0 : i32
    return %c0_i32, %arg1 : i32, i32
  }
  func.func @transform_5(%arg0: i32, %arg1: i32) -> (i32, i32) {
    %c0_i32 = arith.constant 0 : i32
    %c0_i32_0 = arith.constant 0 : i32
    return %arg1, %c0_i32 : i32, i32
  }
  func.func @transform_6(%arg0: i32, %arg1: i32) -> (i32, i32) {
    %c0_i32 = arith.constant 0 : i32
    %c0_i32_0 = arith.constant 0 : i32
    %c0_i32_1 = arith.constant 0 : i32
    return %c0_i32, %c0_i32_0 : i32, i32
  }
  func.func @transform_7(%arg0: i32, %arg1: i32) -> (i32, i32) {
    %c0_i32 = arith.constant 0 : i32
    %c0_i32_0 = arith.constant 0 : i32
    return %arg0, %c0_i32 : i32, i32
  }
}

</mosaic_0001>

<llo_original>
// kernel: tpu_custom_call.1
$region0: #{tpu_custom_call.1}
  #allocation0 [shape = 'u32[]', space=smem, size = 0x4, offset = 0x4, fixed_abs, tag = 'smem constant byte address 0x4 - core index']
  #allocation1 [shape = 'u32[144,128]{1,0:T(1,128)}', space=vmem, size = 0x12000, scoped, tag = 'internal scratch']
  %s0 = inlined_call_operand.hbm [shape: bf16[32,256], index: 0, kind: input, shape index: {}]
  %s1 = inlined_call_operand.hbm [shape: s8[256,512], index: 1, kind: input, shape index: {}]
  %s2 = inlined_call_operand.hbm [shape: f32[1,512], index: 2, kind: input, shape index: {}]
  %s3 = inlined_call_operand.hbm [shape: s8[256,512], index: 3, kind: input, shape index: {}]
  %s4 = inlined_call_operand.hbm [shape: f32[1,512], index: 4, kind: input, shape index: {}]
  %s5 = inlined_call_operand.hbm [shape: s8[512,256], index: 5, kind: input, shape index: {}]
  %s6 = inlined_call_operand.hbm [shape: f32[1,256], index: 6, kind: input, shape index: {}]
  %s7 = inlined_call_operand.hbm [shape: f32[32,256], index: 7, kind: output, shape index: {}]
  %s8 = sld [smem:[#allocation0]]
  $region97: #{tpu_custom_call.1} parent=0
    _
  %s10 = ssub.s32 1, %s8
  %s11 = scalar_select 0, %s10, %s8
  $region1: #{tpu_custom_call.1} parent=0
    #allocation2 [shape = 'u8[16384]{0}', space=vmem, size = 0x4000, scoped, tag = 'input window, operand 0, single buffered']
    #allocation3 [shape = 's32[2]{0}', space=sflag, size = 0x8, scoped, tag = 'scoped memory for tpu_custom_call.1']
    #allocation4 [shape = 's32[2]{0}', space=sflag, size = 0x8, scoped, tag = 'scoped memory for tpu_custom_call.1']
    #allocation5 [shape = 'u8[131072]{0}', space=vmem, size = 0x20000, scoped, tag = 'input window, operand 1']
    #allocation6 [shape = 's32[2]{0}', space=sflag, size = 0x8, scoped, tag = 'scoped memory for tpu_custom_call.1']
    #allocation7 [shape = 'u8[2048]{0}', space=vmem, size = 0x800, scoped, tag = 'input window, operand 2']
    #allocation8 [shape = 'u8[131072]{0}', space=vmem, size = 0x20000, scoped, tag = 'input window, operand 3']
    #allocation9 [shape = 's32[2]{0}', space=sflag, size = 0x8, scoped, tag = 'scoped memory for tpu_custom_call.1']
    #allocation10 [shape = 'u8[2048]{0}', space=vmem, size = 0x800, scoped, tag = 'input window, operand 4']
    #allocation11 [shape = 'u8[131072]{0}', space=vmem, size = 0x20000, scoped, tag = 'input window, operand 5']
    #allocation12 [shape = 's32[2]{0}', space=sflag, size = 0x8, scoped, tag = 'scoped memory for tpu_custom_call.1']
    #allocation13 [shape = 'u8[1024]{0}', space=vmem, size = 0x400, scoped, tag = 'input window, operand 6, single buffered']
    #allocation14 [shape = 'u8[32768]{0}', space=vmem, size = 0x8000, scoped, tag = 'output window, operand 0, single buffered']
    %12 = vsyncpa [#allocation3], 0
    %13 = vsyncpa [#allocation6], 0
    %s14 = scalar_lea.sflag [#allocation6], 1
    %15 = vsyncpa %s14, 0
    %16 = vsyncpa [#allocation9], 0
    %s17 = scalar_lea.sflag [#allocation9], 1
    %18 = vsyncpa %s17, 0
    %19 = vsyncpa [#allocation12], 0
    %s20 = scalar_lea.sflag [#allocation12], 1
    %21 = vsyncpa %s20, 0
    %22 = vsyncpa [#allocation4], 0
    loop: start=0, step=1, limit=4
    $region2: #{tpu_custom_call.1} parent=1 // loop_pre_header
      _
    $region3: #{tpu_custom_call.1} parent=1 // loop_header
      %s24 = sphi 0, %s28
      %p25 = scmp.ge.s32.totalorder %s24, 4
      %s31 = sphi 0, %s43
      %s32 = sphi 0, %s39
      %s33 = sphi 0, %s31
      %s34 = sphi 0, %s32
      %s35 = sphi 0, %s33
      %s36 = sphi 0, %s34
      %s46 = sphi 0, %s48
      %s49 = sphi 0, %s46
      %s50 = sphi 0, %s49
      %s66 = sphi 0, %s50
      %s72 = sphi 0, %s74
      %s75 = sphi 0, %s72
      %s76 = sphi 0, %s75
      %s92 = sphi 0, %s76
      %s98 = sphi 0, %s100
      %s101 = sphi 0, %s98
      %s102 = sphi 0, %s101
      %s118 = sphi 0, %s102
      %s124 = sphi 0, %s126
      %s127 = sphi 0, %s124
      %s128 = sphi 0, %s127
      %s144 = sphi 0, %s128
      %s150 = sphi 0, %s152
      %s153 = sphi 0, %s150
      %s154 = sphi 0, %s153
      %s170 = sphi 0, %s154
      %s176 = sphi 0, %s178
      %s179 = sphi 0, %s176
      %s180 = sphi 0, %s179
      %s196 = sphi 0, %s180
      %s200 = sphi 0, %s200
      %s202 = sphi 0, %s200
      %s203 = sphi 0, %s202
      %s217 = sphi 0, %s203
      %s223 = sphi 0, %s225
      %s226 = sphi 0, %s223
      %s227 = sphi 0, %s226
      %s243 = sphi 0, %s227
    $region4: #{tpu_custom_call.1} parent=1 // loop_header_branch
      %27 = sbr.rel (%p25) target = $region8
    $region5: #{tpu_custom_call.1} parent=1 // loop_body
      %s29 = ssub.s32 %s24, 1
      %s30 = ssub.s32 %s24, 2
      %s37 = sadd.s32 1, %s32
      %p38 = scmp.ge.s32.totalorder %s37, 2
      %s39 = scalar_select %p38, 0, %s37
      %s40 = sadd.s32 1, %s31
      %s41 = scalar_select %p38, %s40, %s31
      %p42 = scmp.ge.s32.totalorder %s41, 1
      %s43 = scalar_select %p42, 0, %s41
      %s44 = ssub.s32 %s31, %s43
      %p45 = scmp.eq.s32.totalorder %s44, 0
      %s47 = sadd.s32 %s46, 1
      %s48 = scalar_select %p45, %s46, %s47
      %p51 = pneg %p45
      %p52 = scmp.eq.s32.totalorder %s24, 1
      %p53 = por %p51, %p52
      %p54 = scmp.ne.s32.totalorder %s46, %s49
      %p55 = scmp.eq.s32.totalorder %s24, 0
      %p56 = por %p54, %p55
      %p57 = scmp.ne.s32.totalorder %s46, %s49
      %p58 = scmp.eq.s32.totalorder %s29, 1
      %p59 = por %p57, %p58
      %p60 = scmp.ne.s32.totalorder %s49, %s50
      %p61 = scmp.eq.s32.totalorder %s29, 0
      %p62 = por %p60, %p61
      %p63 = scmp.ne.s32.totalorder %s49, %s50
      %p64 = scmp.eq.s32.totalorder %s30, 1
      %p65 = por %p63, %p64
      %p67 = scmp.ne.s32.totalorder %s50, %s66
      %p68 = scmp.eq.s32.totalorder %s30, 0
      %p69 = por %p67, %p68
      %s70 = ssub.s32 %s32, %s39
      %p71 = scmp.eq.s32.totalorder %s70, 0
      %s73 = sadd.s32 %s72, 1
      %s74 = scalar_select %p71, %s72, %s73
      %p77 = pneg %p71
      %p78 = scmp.eq.s32.totalorder %s24, 1
      %p79 = por %p77, %p78
      %p80 = scmp.ne.s32.totalorder %s72, %s75
      %p81 = scmp.eq.s32.totalorder %s24, 0
      %p82 = por %p80, %p81
      %p83 = scmp.ne.s32.totalorder %s72, %s75
      %p84 = scmp.eq.s32.totalorder %s29, 1
      %p85 = por %p83, %p84
      %p86 = scmp.ne.s32.totalorder %s75, %s76
      %p87 = scmp.eq.s32.totalorder %s29, 0
      %p88 = por %p86, %p87
      %p89 = scmp.ne.s32.totalorder %s75, %s76
      %p90 = scmp.eq.s32.totalorder %s30, 1
      %p91 = por %p89, %p90
      %p93 = scmp.ne.s32.totalorder %s76, %s92
      %p94 = scmp.eq.s32.totalorder %s30, 0
      %p95 = por %p93, %p94
      %s96 = ssub.s32 %s32, %s39
      %p97 = scmp.eq.s32.totalorder %s96, 0
      %s99 = sadd.s32 %s98, 1
      %s100 = scalar_select %p97, %s98, %s99
      %p103 = pneg %p97
      %p104 = scmp.eq.s32.totalorder %s24, 1
      %p105 = por %p103, %p104
      %p106 = scmp.ne.s32.totalorder %s98, %s101
      %p107 = scmp.eq.s32.totalorder %s24, 0
      %p108 = por %p106, %p107
      %p109 = scmp.ne.s32.totalorder %s98, %s101
      %p110 = scmp.eq.s32.totalorder %s29, 1
      %p111 = por %p109, %p110
      %p112 = scmp.ne.s32.totalorder %s101, %s102
      %p113 = scmp.eq.s32.totalorder %s29, 0
      %p114 = por %p112, %p113
      %p115 = scmp.ne.s32.totalorder %s101, %s102
      %p116 = scmp.eq.s32.totalorder %s30, 1
      %p117 = por %p115, %p116
      %p119 = scmp.ne.s32.totalorder %s102, %s118
      %p120 = scmp.eq.s32.totalorder %s30, 0
      %p121 = por %p119, %p120
      %s122 = ssub.s32 %s32, %s39
      %p123 = scmp.eq.s32.totalorder %s122, 0
      %s125 = sadd.s32 %s124, 1
      %s126 = scalar_select %p123, %s124, %s125
      %p129 = pneg %p123
      %p130 = scmp.eq.s32.totalorder %s24, 1
      %p131 = por %p129, %p130
      %p132 = scmp.ne.s32.totalorder %s124, %s127
      %p133 = scmp.eq.s32.totalorder %s24, 0
      %p134 = por %p132, %p133
      %p135 = scmp.ne.s32.totalorder %s124, %s127
      %p136 = scmp.eq.s32.totalorder %s29, 1
      %p137 = por %p135, %p136
      %p138 = scmp.ne.s32.totalorder %s127, %s128
      %p139 = scmp.eq.s32.totalorder %s29, 0
      %p140 = por %p138, %p139
      %p141 = scmp.ne.s32.totalorder %s127, %s128
      %p142 = scmp.eq.s32.totalorder %s30, 1
      %p143 = por %p141, %p142
      %p145 = scmp.ne.s32.totalorder %s128, %s144
      %p146 = scmp.eq.s32.totalorder %s30, 0
      %p147 = por %p145, %p146
      %s148 = ssub.s32 %s32, %s39
      %p149 = scmp.eq.s32.totalorder %s148, 0
      %s151 = sadd.s32 %s150, 1
      %s152 = scalar_select %p149, %s150, %s151
      %p155 = pneg %p149
      %p156 = scmp.eq.s32.totalorder %s24, 1
      %p157 = por %p155, %p156
      %p158 = scmp.ne.s32.totalorder %s150, %s153
      %p159 = scmp.eq.s32.totalorder %s24, 0
      %p160 = por %p158, %p159
      %p161 = scmp.ne.s32.totalorder %s150, %s153
      %p162 = scmp.eq.s32.totalorder %s29, 1
      %p163 = por %p161, %p162
      %p164 = scmp.ne.s32.totalorder %s153, %s154
      %p165 = scmp.eq.s32.totalorder %s29, 0
      %p166 = por %p164, %p165
      %p167 = scmp.ne.s32.totalorder %s153, %s154
      %p168 = scmp.eq.s32.totalorder %s30, 1
      %p169 = por %p167, %p168
      %p171 = scmp.ne.s32.totalorder %s154, %s170
      %p172 = scmp.eq.s32.totalorder %s30, 0
      %p173 = por %p171, %p172
      %s174 = ssub.s32 %s32, %s39
      %p175 = scmp.eq.s32.totalorder %s174, 0
      %s177 = sadd.s32 %s176, 1
      %s178 = scalar_select %p175, %s176, %s177
      %p181 = pneg %p175
      %p182 = scmp.eq.s32.totalorder %s24, 1
      %p183 = por %p181, %p182
      %p184 = scmp.ne.s32.totalorder %s176, %s179
      %p185 = scmp.eq.s32.totalorder %s24, 0
      %p186 = por %p184, %p185
      %p187 = scmp.ne.s32.totalorder %s176, %s179
      %p188 = scmp.eq.s32.totalorder %s29, 1
      %p189 = por %p187, %p188
      %p190 = scmp.ne.s32.totalorder %s179, %s180
      %p191 = scmp.eq.s32.totalorder %s29, 0
      %p192 = por %p190, %p191
      %p193 = scmp.ne.s32.totalorder %s179, %s180
      %p194 = scmp.eq.s32.totalorder %s30, 1
      %p195 = por %p193, %p194
      %p197 = scmp.ne.s32.totalorder %s180, %s196
      %p198 = scmp.eq.s32.totalorder %s30, 0
      %p199 = por %p197, %p198
      %s201 = sadd.s32 %s200, 1
      %p204 = scmp.eq.s32.totalorder %s24, 1
      %p205 = scmp.ne.s32.totalorder %s200, %s202
      %p206 = scmp.eq.s32.totalorder %s24, 0
      %p207 = por %p205, %p206
      %p208 = scmp.ne.s32.totalorder %s200, %s202
      %p209 = scmp.eq.s32.totalorder %s29, 1
      %p210 = por %p208, %p209
      %p211 = scmp.ne.s32.totalorder %s202, %s203
      %p212 = scmp.eq.s32.totalorder %s29, 0
      %p213 = por %p211, %p212
      %p214 = scmp.ne.s32.totalorder %s202, %s203
      %p215 = scmp.eq.s32.totalorder %s30, 1
      %p216 = por %p214, %p215
      %p218 = scmp.ne.s32.totalorder %s203, %s217
      %p219 = scmp.eq.s32.totalorder %s30, 0
      %p220 = por %p218, %p219
      %s221 = ssub.s32 %s31, %s43
      %p222 = scmp.eq.s32.totalorder %s221, 0
      %s224 = sadd.s32 %s223, 1
      %s225 = scalar_select %p222, %s223, %s224
      %p228 = pneg %p222
      %p229 = scmp.eq.s32.totalorder %s24, 1
      %p230 = por %p228, %p229
      %p231 = scmp.ne.s32.totalorder %s223, %s226
      %p232 = scmp.eq.s32.totalorder %s24, 0
      %p233 = por %p231, %p232
      %p234 = scmp.ne.s32.totalorder %s223, %s226
      %p235 = scmp.eq.s32.totalorder %s29, 1
      %p236 = por %p234, %p235
      %p237 = scmp.ne.s32.totalorder %s226, %s227
      %p238 = scmp.eq.s32.totalorder %s29, 0
      %p239 = por %p237, %p238
      %p240 = scmp.ne.s32.totalorder %s226, %s227
      %p241 = scmp.eq.s32.totalorder %s30, 1
      %p242 = por %p240, %p241
      %p244 = scmp.ne.s32.totalorder %s227, %s243
      %p245 = scmp.eq.s32.totalorder %s30, 0
      %p246 = por %p244, %p245
      %p247 = scmp.le.s32.totalorder 1, %s24
      %p248 = scmp.lt.s32.totalorder %s24, 3
      %p249 = pnand %p247, %p248
      %p250 = pneg %p249
      // Predicated region
      $region9: #{tpu_custom_call.1} parent=5 // pred_check
        _
      $region10: #{tpu_custom_call.1} parent=5 // pred_check_branch
        %252 = sbr.rel (%p249) target = $region12
      $region11: #{tpu_custom_call.1} parent=5 // pred_region
        %s253 = ssub.s32 %s24, 1
        // Predicated region
        $region13: #{tpu_custom_call.1} parent=11 // pred_check
          %p254 = pneg %p62
        $region14: #{tpu_custom_call.1} parent=11 // pred_check_branch
          %256 = sbr.rel (%p254) target = $region16
        $region15: #{tpu_custom_call.1} parent=11 // pred_region
          %s257 = smul.u32 4, %s33
          %s259 = ssub.s32 512, 512
          %260 = vsyncadd [#allocation3], %s259
          %s261 = smul.addr %s257, 2
          %s262 = smul.addr %s261, 64
          %s263 = scalar_lea.hbm %s0, %s262
          %s264 = sshll.u32 [#allocation2], 4
          %s265 = int_to_ptr.vmem [resolvable:$true] %s264
          %270 = dma.hbm_to_vmem [thread:$0]  %s263, 512, %s265, [#allocation3], 128, 128, 8
        $region16: #{tpu_custom_call.1} parent=11 // pred_fallthru
          _
        // Predicated region
        $region17: #{tpu_custom_call.1} parent=11 // pred_check
          %p271 = pneg %p213
        $region18: #{tpu_custom_call.1} parent=11 // pred_check_branch
          %273 = sbr.rel (%p271) target = $region20
        $region19: #{tpu_custom_call.1} parent=11 // pred_region
          %s275 = ssub.s32 32, 32
          %276 = vsyncadd [#allocation12], %s275
          %s278 = sshll.u32 [#allocation13], 4
          %s279 = int_to_ptr.vmem [resolvable:$true] %s278
          %281 = dma.hbm_to_vmem [thread:$0]  %s6, 32, %s279, [#allocation12]
        $region20: #{tpu_custom_call.1} parent=11 // pred_fallthru
          _
      $region12: #{tpu_custom_call.1} parent=5 // pred_fallthru
        _
      %p282 = scmp.lt.s32.totalorder %s24, 2
      // Predicated region
      $region21: #{tpu_custom_call.1} parent=5 // pred_check
        %p283 = pneg %p282
      $region22: #{tpu_custom_call.1} parent=5 // pred_check_branch
        %285 = sbr.rel (%p283) target = $region24
      $region23: #{tpu_custom_call.1} parent=5 // pred_region
        // Predicated region
        $region25: #{tpu_custom_call.1} parent=23 // pred_check
          %p286 = pneg %p82
        $region26: #{tpu_custom_call.1} parent=23 // pred_check_branch
          %288 = sbr.rel (%p286) target = $region28
        $region27: #{tpu_custom_call.1} parent=23 // pred_region
          %s289 = sand.u32 %s24, 1
          %s290 = scalar_lea.sflag [#allocation6], %s289
          %s291 = sand.u32 %s72, 1
          %s292 = smul.addr %s291, 128
          %s293 = scalar_lea.vmem [#allocation5], %s292
          %s294 = smul.u32 2, %s32
          %s296 = ssub.s32 2048, 2048
          %297 = vsyncadd %s290, %s296
          %s298 = smul.addr %s294, 128
          %s299 = scalar_lea.hbm %s1, %s298
          %s300 = sshll.u32 %s293, 4
          %s301 = int_to_ptr.vmem [resolvable:$true] %s300
          %306 = dma.hbm_to_vmem [thread:$0]  %s299, 2048, %s301, %s290, 512, 256, 16
        $region28: #{tpu_custom_call.1} parent=23 // pred_fallthru
          _
        // Predicated region
        $region29: #{tpu_custom_call.1} parent=23 // pred_check
          %p307 = pneg %p108
        $region30: #{tpu_custom_call.1} parent=23 // pred_check_branch
          %309 = sbr.rel (%p307) target = $region32
        $region31: #{tpu_custom_call.1} parent=23 // pred_region
          %s310 = sand.u32 %s24, 1
          %s311 = scalar_lea.sflag [#allocation6], %s310
          %s312 = sand.u32 %s98, 1
          %s313 = smul.addr %s312, 2
          %s314 = scalar_lea.vmem [#allocation7], %s313
          %s315 = smul.u32 2, %s32
          %s317 = ssub.s32 32, 32
          %318 = vsyncadd %s311, %s317
          %s319 = smul.addr %s315, 16
          %s320 = scalar_lea.hbm %s2, %s319
          %s322 = sshll.u32 %s314, 4
          %s323 = int_to_ptr.vmem [resolvable:$true] %s322
          %325 = dma.hbm_to_vmem [thread:$0]  %s320, 32, %s323, %s311
        $region32: #{tpu_custom_call.1} parent=23 // pred_fallthru
          _
        // Predicated region
        $region33: #{tpu_custom_call.1} parent=23 // pred_check
          %p326 = pneg %p134
        $region34: #{tpu_custom_call.1} parent=23 // pred_check_branch
          %328 = sbr.rel (%p326) target = $region36
        $region35: #{tpu_custom_call.1} parent=23 // pred_region
          %s329 = sand.u32 %s24, 1
          %s330 = scalar_lea.sflag [#allocation9], %s329
          %s331 = sand.u32 %s124, 1
          %s332 = smul.addr %s331, 128
          %s333 = scalar_lea.vmem [#allocation8], %s332
          %s334 = smul.u32 2, %s32
          %s336 = ssub.s32 2048, 2048
          %337 = vsyncadd %s330, %s336
          %s338 = smul.addr %s334, 128
          %s339 = scalar_lea.hbm %s3, %s338
          %s340 = sshll.u32 %s333, 4
          %s341 = int_to_ptr.vmem [resolvable:$true] %s340
          %346 = dma.hbm_to_vmem [thread:$0]  %s339, 2048, %s341, %s330, 512, 256, 16
        $region36: #{tpu_custom_call.1} parent=23 // pred_fallthru
          _
        // Predicated region
        $region37: #{tpu_custom_call.1} parent=23 // pred_check
          %p347 = pneg %p160
        $region38: #{tpu_custom_call.1} parent=23 // pred_check_branch
          %349 = sbr.rel (%p347) target = $region40
        $region39: #{tpu_custom_call.1} parent=23 // pred_region
          %s350 = sand.u32 %s24, 1
          %s351 = scalar_lea.sflag [#allocation9], %s350
          %s352 = sand.u32 %s150, 1
          %s353 = smul.addr %s352, 2
          %s354 = scalar_lea.vmem [#allocation10], %s353
          %s355 = smul.u32 2, %s32
          %s357 = ssub.s32 32, 32
          %358 = vsyncadd %s351, %s357
          %s359 = smul.addr %s355, 16
          %s360 = scalar_lea.hbm %s4, %s359
          %s362 = sshll.u32 %s354, 4
          %s363 = int_to_ptr.vmem [resolvable:$true] %s362
          %365 = dma.hbm_to_vmem [thread:$0]  %s360, 32, %s363, %s351
        $region40: #{tpu_custom_call.1} parent=23 // pred_fallthru
          _
        // Predicated region
        $region41: #{tpu_custom_call.1} parent=23 // pred_check
          %p366 = pneg %p186
        $region42: #{tpu_custom_call.1} parent=23 // pred_check_branch
          %368 = sbr.rel (%p366) target = $region44
        $region43: #{tpu_custom_call.1} parent=23 // pred_region
          %s369 = sand.u32 %s24, 1
          %s370 = scalar_lea.sflag [#allocation12], %s369
          %s371 = sand.u32 %s176, 1
          %s372 = smul.addr %s371, 128
          %s373 = scalar_lea.vmem [#allocation11], %s372
          %s374 = smul.u32 8, %s32
          %s376 = ssub.s32 2048, 2048
          %377 = vsyncadd %s370, %s376
          %s378 = smul.addr %s374, 2
          %s379 = smul.addr %s378, 128
          %s380 = scalar_lea.hbm %s5, %s379
          %s381 = sshll.u32 %s373, 4
          %s382 = int_to_ptr.vmem [resolvable:$true] %s381
          %387 = dma.hbm_to_vmem [thread:$0]  %s380, 2048, %s382, %s370, 256, 256, 16
        $region44: #{tpu_custom_call.1} parent=23 // pred_fallthru
          _
      $region24: #{tpu_custom_call.1} parent=5 // pred_fallthru
        _
      %p388 = scmp.le.s32.totalorder 1, %s24
      %p389 = scmp.lt.s32.totalorder %s24, 3
      %p390 = pnand %p388, %p389
      %p391 = pneg %p390
      // Predicated region
      $region45: #{tpu_custom_call.1} parent=5 // pred_check
        _
      $region46: #{tpu_custom_call.1} parent=5 // pred_check_branch
        %393 = sbr.rel (%p390) target = $region48
      $region47: #{tpu_custom_call.1} parent=5 // pred_region
        %s394 = ssub.s32 %s24, 1
        // Predicated region
        $region49: #{tpu_custom_call.1} parent=47 // pred_check
          %p395 = pneg %p62
        $region50: #{tpu_custom_call.1} parent=47 // pred_check_branch
          %397 = sbr.rel (%p395) target = $region52
        $region51: #{tpu_custom_call.1} parent=47 // pred_region
          %398 = dma.done [#allocation3], 512
        $region52: #{tpu_custom_call.1} parent=47 // pred_fallthru
          _
        %s399 = sand.u32 %s29, 1
        %s400 = scalar_lea.sflag [#allocation6], %s399
        %s401 = sand.u32 %s75, 1
        %s402 = smul.addr %s401, 128
        %s403 = scalar_lea.vmem [#allocation5], %s402
        // Predicated region
        $region53: #{tpu_custom_call.1} parent=47 // pred_check
          %p404 = pneg %p88
        $region54: #{tpu_custom_call.1} parent=47 // pred_check_branch
          %406 = sbr.rel (%p404) target = $region56
        $region55: #{tpu_custom_call.1} parent=47 // pred_region
          %407 = dma.done %s400, 2048
        $region56: #{tpu_custom_call.1} parent=47 // pred_fallthru
          _
        %s408 = sand.u32 %s29, 1
        %s409 = scalar_lea.sflag [#allocation6], %s408
        %s410 = sand.u32 %s101, 1
        %s411 = smul.addr %s410, 2
        %s412 = scalar_lea.vmem [#allocation7], %s411
        // Predicated region
        $region57: #{tpu_custom_call.1} parent=47 // pred_check
          %p413 = pneg %p114
        $region58: #{tpu_custom_call.1} parent=47 // pred_check_branch
          %415 = sbr.rel (%p413) target = $region60
        $region59: #{tpu_custom_call.1} parent=47 // pred_region
          %416 = dma.done %s409, 32
        $region60: #{tpu_custom_call.1} parent=47 // pred_fallthru
          _
        %s417 = sand.u32 %s29, 1
        %s418 = scalar_lea.sflag [#allocation9], %s417
        %s419 = sand.u32 %s127, 1
        %s420 = smul.addr %s419, 128
        %s421 = scalar_lea.vmem [#allocation8], %s420
        // Predicated region
        $region61: #{tpu_custom_call.1} parent=47 // pred_check
          %p422 = pneg %p140
        $region62: #{tpu_custom_call.1} parent=47 // pred_check_branch
          %424 = sbr.rel (%p422) target = $region64
        $region63: #{tpu_custom_call.1} parent=47 // pred_region
          %425 = dma.done %s418, 2048
        $region64: #{tpu_custom_call.1} parent=47 // pred_fallthru
          _
        %s426 = sand.u32 %s29, 1
        %s427 = scalar_lea.sflag [#allocation9], %s426
        %s428 = sand.u32 %s153, 1
        %s429 = smul.addr %s428, 2
        %s430 = scalar_lea.vmem [#allocation10], %s429
        // Predicated region
        $region65: #{tpu_custom_call.1} parent=47 // pred_check
          %p431 = pneg %p166
        $region66: #{tpu_custom_call.1} parent=47 // pred_check_branch
          %433 = sbr.rel (%p431) target = $region68
        $region67: #{tpu_custom_call.1} parent=47 // pred_region
          %434 = dma.done %s427, 32
        $region68: #{tpu_custom_call.1} parent=47 // pred_fallthru
          _
        %s435 = sand.u32 %s29, 1
        %s436 = scalar_lea.sflag [#allocation12], %s435
        %s437 = sand.u32 %s179, 1
        %s438 = smul.addr %s437, 128
        %s439 = scalar_lea.vmem [#allocation11], %s438
        // Predicated region
        $region69: #{tpu_custom_call.1} parent=47 // pred_check
          %p440 = pneg %p192
        $region70: #{tpu_custom_call.1} parent=47 // pred_check_branch
          %442 = sbr.rel (%p440) target = $region72
        $region71: #{tpu_custom_call.1} parent=47 // pred_region
          %443 = dma.done %s436, 2048
        $region72: #{tpu_custom_call.1} parent=47 // pred_fallthru
          _
        // Predicated region
        $region73: #{tpu_custom_call.1} parent=47 // pred_check
          %p444 = pneg %p213
        $region74: #{tpu_custom_call.1} parent=47 // pred_check_branch
          %446 = sbr.rel (%p444) target = $region76
        $region75: #{tpu_custom_call.1} parent=47 // pred_region
          %447 = dma.done [#allocation12], 32
        $region76: #{tpu_custom_call.1} parent=47 // pred_fallthru
          _
        %p448 = pneg %p62
        %p449 = pneg %p59
        %s450 = sand.u32 %s29, 1
        %s451 = scalar_lea.sflag [#allocation6], %s450
        %s452 = sand.u32 %s75, 1
        %s453 = smul.addr %s452, 128
        %s454 = scalar_lea.vmem [#allocation5], %s453
        %p455 = pneg %p88
        %p456 = pneg %p85
        %s457 = sand.u32 %s29, 1
        %s458 = scalar_lea.sflag [#allocation6], %s457
        %s459 = sand.u32 %s101, 1
        %s460 = smul.addr %s459, 2
        %s461 = scalar_lea.vmem [#allocation7], %s460
        %p462 = pneg %p114
        %p463 = pneg %p111
        %s464 = sand.u32 %s29, 1
        %s465 = scalar_lea.sflag [#allocation9], %s464
        %s466 = sand.u32 %s127, 1
        %s467 = smul.addr %s466, 128
        %s468 = scalar_lea.vmem [#allocation8], %s467
        %p469 = pneg %p140
        %p470 = pneg %p137
        %s471 = sand.u32 %s29, 1
        %s472 = scalar_lea.sflag [#allocation9], %s471
        %s473 = sand.u32 %s153, 1
        %s474 = smul.addr %s473, 2
        %s475 = scalar_lea.vmem [#allocation10], %s474
        %p476 = pneg %p166
        %p477 = pneg %p163
        %s478 = sand.u32 %s29, 1
        %s479 = scalar_lea.sflag [#allocation12], %s478
        %s480 = sand.u32 %s179, 1
        %s481 = smul.addr %s480, 128
        %s482 = scalar_lea.vmem [#allocation11], %s481
        %p483 = pneg %p192
        %p484 = pneg %p189
        %p485 = pneg %p213
        %p486 = pneg %p210
        %p487 = pneg %p239
        %p488 = pneg %p236
        %s489 = smul.u32 4, %s33
        %s490 = smul.u32 2, %s34
        %s491 = smul.u32 2, %s34
        %s492 = smul.u32 2, %s34
        %s493 = smul.u32 2, %s34
        %s494 = smul.u32 8, %s34
        %s495 = smul.u32 4, %s33
        %p496 = scmp.eq.s32.totalorder %s34, 0
        // Predicated region
        $region77: #{tpu_custom_call.1} parent=47 // pred_check
          %p497 = pneg %p496
        $region78: #{tpu_custom_call.1} parent=47 // pred_check_branch
          %499 = sbr.rel (%p497) target = $region80
        $region79: #{tpu_custom_call.1} parent=47 // pred_region
          %500 = vst [vmem:[#allocation14] sm:$0xff] 0.0
          %501 = vst [vmem:[#allocation14 + $0x8] sm:$0xff] 0.0
          %502 = vst [vmem:[#allocation14 + $0x10] sm:$0xff] 0.0
          %503 = vst [vmem:[#allocation14 + $0x18] sm:$0xff] 0.0
          %504 = vst [vmem:[#allocation14 + $0x20] sm:$0xff] 0.0
          %505 = vst [vmem:[#allocation14 + $0x28] sm:$0xff] 0.0
          %506 = vst [vmem:[#allocation14 + $0x30] sm:$0xff] 0.0
          %507 = vst [vmem:[#allocation14 + $0x38] sm:$0xff] 0.0
        $region80: #{tpu_custom_call.1} parent=47 // pred_fallthru
          _
        %v508 = vld [vmem:[#allocation2] sm:$0xff]
        %v509 = vld [vmem:[#allocation2 + $0x8] sm:$0xff]
        %v510 = vld [vmem:[#allocation2 + $0x10] sm:$0xff]
        %v511 = vld [vmem:[#allocation2 + $0x18] sm:$0xff]
        %v512 = vld [vmem:[%s403] sm:$0xff]
        %v513 = vld [vmem:[%s403 + $0x8] sm:$0xff]
        %v514 = vld [vmem:[%s403 + $0x10] sm:$0xff]
        %v515 = vld [vmem:[%s403 + $0x18] sm:$0xff]
        %v516 = vld [vmem:[%s403 + $0x20] sm:$0xff]
        %v517 = vld [vmem:[%s403 + $0x28] sm:$0xff]
        %v518 = vld [vmem:[%s403 + $0x30] sm:$0xff]
        %v519 = vld [vmem:[%s403 + $0x38] sm:$0xff]
        %v520 = vld [vmem:[%s403 + $0x40] sm:$0xff]
        %v521 = vld [vmem:[%s403 + $0x48] sm:$0xff]
        %v522 = vld [vmem:[%s403 + $0x50] sm:$0xff]
        %v523 = vld [vmem:[%s403 + $0x58] sm:$0xff]
        %v524 = vld [vmem:[%s403 + $0x60] sm:$0xff]
        %v525 = vld [vmem:[%s403 + $0x68] sm:$0xff]
        %v526 = vld [vmem:[%s403 + $0x70] sm:$0xff]
        %v527 = vld [vmem:[%s403 + $0x78] sm:$0xff]
        %v528 = vunpack.c.l.s8.bf16 %v512
        %v529 = vunpack.c.l.s8.bf16 %v513
        %v530 = vunpack.c.h.s8.bf16 %v512
        %v531 = vunpack.c.h.s8.bf16 %v513
        %v532 = vunpack.c.l.s8.bf16 %v514
        %v533 = vunpack.c.l.s8.bf16 %v515
        %v534 = vunpack.c.h.s8.bf16 %v514
        %v535 = vunpack.c.h.s8.bf16 %v515
        %v536 = vunpack.c.l.s8.bf16 %v516
        %v537 = vunpack.c.l.s8.bf16 %v517
        %v538 = vunpack.c.h.s8.bf16 %v516
        %v539 = vunpack.c.h.s8.bf16 %v517
        %v540 = vunpack.c.l.s8.bf16 %v518
        %v541 = vunpack.c.l.s8.bf16 %v519
        %v542 = vunpack.c.h.s8.bf16 %v518
        %v543 = vunpack.c.h.s8.bf16 %v519
        %v544 = vunpack.c.l.s8.bf16 %v520
        %v545 = vunpack.c.l.s8.bf16 %v521
        %v546 = vunpack.c.h.s8.bf16 %v520
        %v547 = vunpack.c.h.s8.bf16 %v521
        %v548 = vunpack.c.l.s8.bf16 %v522
        %v549 = vunpack.c.l.s8.bf16 %v523
        %v550 = vunpack.c.h.s8.bf16 %v522
        %v551 = vunpack.c.h.s8.bf16 %v523
        %v552 = vunpack.c.l.s8.bf16 %v524
        %v553 = vunpack.c.l.s8.bf16 %v525
        %v554 = vunpack.c.h.s8.bf16 %v524
        %v555 = vunpack.c.h.s8.bf16 %v525
        %v556 = vunpack.c.l.s8.bf16 %v526
        %v557 = vunpack.c.l.s8.bf16 %v527
        %v558 = vunpack.c.h.s8.bf16 %v526
        %v559 = vunpack.c.h.s8.bf16 %v527
        %v564 = vunpack.c.l.b16 %v508
        %v565 = vunpack.c.h.b16 %v508
        %v566 = vunpack.c.l.b16 %v509
        %v567 = vunpack.c.h.b16 %v509
        %v568 = vunpack.c.l.b16 %v510
        %v569 = vunpack.c.h.b16 %v510
        %v570 = vunpack.c.l.b16 %v511
        %v571 = vunpack.c.h.b16 %v511
        %v572 = vpack.c.b16 %v566, %v564
        %v573 = vpack.c.b16 %v567, %v565
        %v574 = vpack.c.b16 %v570, %v568
        %v575 = vpack.c.b16 %v571, %v569
        %580 = vmatprep.subr.bf16.mxu0 %v529
        %581 = vmatpush1.bf16.msra.mxu0 %v528
        %582 = vmatprep.subr.bf16.mxu0 %v531
        %583 = vmatpush1.bf16.msra.mxu0 %v530
        %584 = vmatprep.subr.bf16.mxu0 %v533
        %585 = vmatpush1.bf16.msra.mxu0 %v532
        %586 = vmatprep.subr.bf16.mxu0 %v535
        %587 = vmatpush1.bf16.msra.mxu0 %v534
        %588 = vmatprep.subr.bf16.mxu0 %v537
        %589 = vmatpush1.bf16.msra.mxu0 %v536
        %590 = vmatprep.subr.bf16.mxu0 %v539
        %591 = vmatpush1.bf16.msra.mxu0 %v538
        %592 = vmatprep.subr.bf16.mxu0 %v541
        %593 = vmatpush1.bf16.msra.mxu0 %v540
        %594 = vmatprep.subr.bf16.mxu0 %v543
        %595 = vmatpush1.bf16.msra.mxu0 %v542
        %596 = vmatprep.subr.bf16.mxu0 %v545
        %597 = vmatpush1.bf16.msra.mxu0 %v544
        %598 = vmatprep.subr.bf16.mxu0 %v547
        %599 = vmatpush1.bf16.msra.mxu0 %v546
        %600 = vmatprep.subr.bf16.mxu0 %v549
        %601 = vmatpush1.bf16.msra.mxu0 %v548
        %602 = vmatprep.subr.bf16.mxu0 %v551
        %603 = vmatpush1.bf16.msra.mxu0 %v550
        %604 = vmatprep.subr.bf16.mxu0 %v553
        %605 = vmatpush1.bf16.msra.mxu0 %v552
        %606 = vmatprep.subr.bf16.mxu0 %v555
        %607 = vmatpush1.bf16.msra.mxu0 %v554
        %608 = vmatprep.subr.bf16.mxu0 %v557
        %609 = vmatpush1.bf16.msra.mxu0 %v556
        %610 = vmatprep.subr.bf16.mxu0 %v559
        %611 = vmatpush1.bf16.msra.mxu0 %v558
        %612 = vmatprep.mubr.bf16.mxu0 %v573
        %613 = vmatmul.mubr.bf16.gmra.mrb[0].mxu0 %v572
        %v614 = vpop.f32.mrb[0].mxu0
        %v615 = vadd.f32 0.0, %v614
        %v616 = vpop.f32.mrb[0].mxu0
        %v617 = vadd.f32 0.0, %v616
        %v618 = vpop.f32.mrb[0].mxu0
        %v619 = vadd.f32 0.0, %v618
        %v620 = vpop.f32.mrb[0].mxu0
        %v621 = vadd.f32 0.0, %v620
        %622 = vmatprep.mubr.bf16.mxu0 %v575
        %623 = vmatmul.mubr.bf16.gmra.mrb[0].mxu0 %v574
        %v624 = vpop.f32.mrb[0].mxu0
        %v625 = vadd.f32 0.0, %v624
        %v626 = vpop.f32.mrb[0].mxu0
        %v627 = vadd.f32 0.0, %v626
        %v628 = vpop.f32.mrb[0].mxu0
        %v629 = vadd.f32 0.0, %v628
        %v630 = vpop.f32.mrb[0].mxu0
        %v631 = vadd.f32 0.0, %v630
        %632 = vdwg.mxu0
        %v633 = vld [vmem:[%s412] sm:$0x3]
        %v635 = vlaneseq
        %v636 = vshrl.u32 %v635, 7
        %v637 = vsub.s32 0, %v636
        %v638 = vrot.slane %v633, %v637
        %v639 = vlaneseq
        %v640 = vshrl.u32 %v639, 7
        %v641 = vsub.s32 1, %v640
        %v642 = vrot.slane %v633, %v641
        %v645 = vmul.f32 %v615, %v638
        %v646 = vmul.f32 %v617, %v642
        %v647 = vmul.f32 %v619, %v638
        %v648 = vmul.f32 %v621, %v642
        %v649 = vmul.f32 %v625, %v638
        %v650 = vmul.f32 %v627, %v642
        %v651 = vmul.f32 %v629, %v638
        %v652 = vmul.f32 %v631, %v642
        %v653 = vld [vmem:[%s421] sm:$0xff]
        %v654 = vld [vmem:[%s421 + $0x8] sm:$0xff]
        %v655 = vld [vmem:[%s421 + $0x10] sm:$0xff]
        %v656 = vld [vmem:[%s421 + $0x18] sm:$0xff]
        %v657 = vld [vmem:[%s421 + $0x20] sm:$0xff]
        %v658 = vld [vmem:[%s421 + $0x28] sm:$0xff]
        %v659 = vld [vmem:[%s421 + $0x30] sm:$0xff]
        %v660 = vld [vmem:[%s421 + $0x38] sm:$0xff]
        %v661 = vld [vmem:[%s421 + $0x40] sm:$0xff]
        %v662 = vld [vmem:[%s421 + $0x48] sm:$0xff]
        %v663 = vld [vmem:[%s421 + $0x50] sm:$0xff]
        %v664 = vld [vmem:[%s421 + $0x58] sm:$0xff]
        %v665 = vld [vmem:[%s421 + $0x60] sm:$0xff]
        %v666 = vld [vmem:[%s421 + $0x68] sm:$0xff]
        %v667 = vld [vmem:[%s421 + $0x70] sm:$0xff]
        %v668 = vld [vmem:[%s421 + $0x78] sm:$0xff]
        %v669 = vunpack.c.l.s8.bf16 %v653
        %v670 = vunpack.c.l.s8.bf16 %v654
        %v671 = vunpack.c.h.s8.bf16 %v653
        %v672 = vunpack.c.h.s8.bf16 %v654
        %v673 = vunpack.c.l.s8.bf16 %v655
        %v674 = vunpack.c.l.s8.bf16 %v656
        %v675 = vunpack.c.h.s8.bf16 %v655
        %v676 = vunpack.c.h.s8.bf16 %v656
        %v677 = vunpack.c.l.s8.bf16 %v657
        %v678 = vunpack.c.l.s8.bf16 %v658
        %v679 = vunpack.c.h.s8.bf16 %v657
        %v680 = vunpack.c.h.s8.bf16 %v658
        %v681 = vunpack.c.l.s8.bf16 %v659
        %v682 = vunpack.c.l.s8.bf16 %v660
        %v683 = vunpack.c.h.s8.bf16 %v659
        %v684 = vunpack.c.h.s8.bf16 %v660
        %v685 = vunpack.c.l.s8.bf16 %v661
        %v686 = vunpack.c.l.s8.bf16 %v662
        %v687 = vunpack.c.h.s8.bf16 %v661
        %v688 = vunpack.c.h.s8.bf16 %v662
        %v689 = vunpack.c.l.s8.bf16 %v663
        %v690 = vunpack.c.l.s8.bf16 %v664
        %v691 = vunpack.c.h.s8.bf16 %v663
        %v692 = vunpack.c.h.s8.bf16 %v664
        %v693 = vunpack.c.l.s8.bf16 %v665
        %v694 = vunpack.c.l.s8.bf16 %v666
        %v695 = vunpack.c.h.s8.bf16 %v665
        %v696 = vunpack.c.h.s8.bf16 %v666
        %v697 = vunpack.c.l.s8.bf16 %v667
        %v698 = vunpack.c.l.s8.bf16 %v668
        %v699 = vunpack.c.h.s8.bf16 %v667
        %v700 = vunpack.c.h.s8.bf16 %v668
        %701 = vmatprep.subr.bf16.mxu0 %v670
        %702 = vmatpush1.bf16.msra.mxu0 %v669
        %703 = vmatprep.subr.bf16.mxu0 %v672
        %704 = vmatpush1.bf16.msra.mxu0 %v671
        %705 = vmatprep.subr.bf16.mxu0 %v674
        %706 = vmatpush1.bf16.msra.mxu0 %v673
        %707 = vmatprep.subr.bf16.mxu0 %v676
        %708 = vmatpush1.bf16.msra.mxu0 %v675
        %709 = vmatprep.subr.bf16.mxu0 %v678
        %710 = vmatpush1.bf16.msra.mxu0 %v677
        %711 = vmatprep.subr.bf16.mxu0 %v680
        %712 = vmatpush1.bf16.msra.mxu0 %v679
        %713 = vmatprep.subr.bf16.mxu0 %v682
        %714 = vmatpush1.bf16.msra.mxu0 %v681
        %715 = vmatprep.subr.bf16.mxu0 %v684
        %716 = vmatpush1.bf16.msra.mxu0 %v683
        %717 = vmatprep.subr.bf16.mxu0 %v686
        %718 = vmatpush1.bf16.msra.mxu0 %v685
        %719 = vmatprep.subr.bf16.mxu0 %v688
        %720 = vmatpush1.bf16.msra.mxu0 %v687
        %721 = vmatprep.subr.bf16.mxu0 %v690
        %722 = vmatpush1.bf16.msra.mxu0 %v689
        %723 = vmatprep.subr.bf16.mxu0 %v692
        %724 = vmatpush1.bf16.msra.mxu0 %v691
        %725 = vmatprep.subr.bf16.mxu0 %v694
        %726 = vmatpush1.bf16.msra.mxu0 %v693
        %727 = vmatprep.subr.bf16.mxu0 %v696
        %728 = vmatpush1.bf16.msra.mxu0 %v695
        %729 = vmatprep.subr.bf16.mxu0 %v698
        %730 = vmatpush1.bf16.msra.mxu0 %v697
        %731 = vmatprep.subr.bf16.mxu0 %v700
        %732 = vmatpush1.bf16.msra.mxu0 %v699
        %733 = vmatprep.mubr.bf16.mxu0 %v573
        %734 = vmatmul.mubr.bf16.gmra.mrb[0].mxu0 %v572
        %v735 = vpop.f32.mrb[0].mxu0
        %v736 = vadd.f32 0.0, %v735
        %v737 = vpop.f32.mrb[0].mxu0
        %v738 = vadd.f32 0.0, %v737
        %v739 = vpop.f32.mrb[0].mxu0
        %v740 = vadd.f32 0.0, %v739
        %v741 = vpop.f32.mrb[0].mxu0
        %v742 = vadd.f32 0.0, %v741
        %743 = vmatprep.mubr.bf16.mxu0 %v575
        %744 = vmatmul.mubr.bf16.gmra.mrb[0].mxu0 %v574
        %v745 = vpop.f32.mrb[0].mxu0
        %v746 = vadd.f32 0.0, %v745
        %v747 = vpop.f32.mrb[0].mxu0
        %v748 = vadd.f32 0.0, %v747
        %v749 = vpop.f32.mrb[0].mxu0
        %v750 = vadd.f32 0.0, %v749
        %v751 = vpop.f32.mrb[0].mxu0
        %v752 = vadd.f32 0.0, %v751
        %753 = vdwg.mxu0
        %v754 = vld [vmem:[%s430] sm:$0x3]
        %v756 = vlaneseq
        %v757 = vshrl.u32 %v756, 7
        %v758 = vsub.s32 0, %v757
        %v759 = vrot.slane %v754, %v758
        %v760 = vlaneseq
        %v761 = vshrl.u32 %v760, 7
        %v762 = vsub.s32 1, %v761
        %v763 = vrot.slane %v754, %v762
        %v766 = vmul.f32 %v736, %v759
        %v767 = vmul.f32 %v738, %v763
        %v768 = vmul.f32 %v740, %v759
        %v769 = vmul.f32 %v742, %v763
        %v770 = vmul.f32 %v746, %v759
        %v771 = vmul.f32 %v748, %v763
        %v772 = vmul.f32 %v750, %v759
        %v773 = vmul.f32 %v752, %v763
        %v774 = vxor.u32 %v645, 2147483648
        %v775 = vxor.u32 %v646, 2147483648
        %v776 = vxor.u32 %v647, 2147483648
        %v777 = vxor.u32 %v648, 2147483648
        %v778 = vxor.u32 %v649, 2147483648
        %v779 = vxor.u32 %v650, 2147483648
        %v780 = vxor.u32 %v651, 2147483648
        %v781 = vxor.u32 %v652, 2147483648
        %v782 = vmul.f32 %v774, 1.442695
        %v783 = vpow.pop %v782
        %v784 = vmul.f32 %v775, 1.442695
        %v785 = vpow.pop %v784
        %v786 = vmul.f32 %v776, 1.442695
        %v787 = vpow.pop %v786
        %v788 = vmul.f32 %v777, 1.442695
        %v789 = vpow.pop %v788
        %v790 = vmul.f32 %v778, 1.442695
        %v791 = vpow.pop %v790
        %v792 = vmul.f32 %v779, 1.442695
        %v793 = vpow.pop %v792
        %v794 = vmul.f32 %v780, 1.442695
        %v795 = vpow.pop %v794
        %v796 = vmul.f32 %v781, 1.442695
        %v797 = vpow.pop %v796
        %v798 = vadd.f32 %v783, 1.0
        %v799 = vadd.f32 %v785, 1.0
        %v800 = vadd.f32 %v787, 1.0
        %v801 = vadd.f32 %v789, 1.0
        %v802 = vadd.f32 %v791, 1.0
        %v803 = vadd.f32 %v793, 1.0
        %v804 = vadd.f32 %v795, 1.0
        %v805 = vadd.f32 %v797, 1.0
        %v806 = vrcp.pop %v798
        %v807 = vmul.f32 1.0, %v806
        %v808 = vrcp.pop %v799
        %v809 = vmul.f32 1.0, %v808
        %v810 = vrcp.pop %v800
        %v811 = vmul.f32 1.0, %v810
        %v812 = vrcp.pop %v801
        %v813 = vmul.f32 1.0, %v812
        %v814 = vrcp.pop %v802
        %v815 = vmul.f32 1.0, %v814
        %v816 = vrcp.pop %v803
        %v817 = vmul.f32 1.0, %v816
        %v818 = vrcp.pop %v804
        %v819 = vmul.f32 1.0, %v818
        %v820 = vrcp.pop %v805
        %v821 = vmul.f32 1.0, %v820
        %v822 = vmul.f32 %v645, %v807
        %v823 = vmul.f32 %v646, %v809
        %v824 = vmul.f32 %v647, %v811
        %v825 = vmul.f32 %v648, %v813
        %v826 = vmul.f32 %v649, %v815
        %v827 = vmul.f32 %v650, %v817
        %v828 = vmul.f32 %v651, %v819
        %v829 = vmul.f32 %v652, %v821
        %v830 = vmul.f32 %v822, %v766
        %v831 = vmul.f32 %v823, %v767
        %v832 = vmul.f32 %v824, %v768
        %v833 = vmul.f32 %v825, %v769
        %v834 = vmul.f32 %v826, %v770
        %v835 = vmul.f32 %v827, %v771
        %v836 = vmul.f32 %v828, %v772
        %v837 = vmul.f32 %v829, %v773
        %v838 = vpack.c.bf16 %v832, %v830
        %v839 = vpack.c.bf16 %v833, %v831
        %v840 = vpack.c.bf16 %v836, %v834
        %v841 = vpack.c.bf16 %v837, %v835
        %v842 = vld [vmem:[#allocation14] sm:$0xff]
        %v843 = vld [vmem:[#allocation14 + $0x8] sm:$0xff]
        %v844 = vld [vmem:[#allocation14 + $0x10] sm:$0xff]
        %v845 = vld [vmem:[#allocation14 + $0x18] sm:$0xff]
        %v846 = vld [vmem:[#allocation14 + $0x20] sm:$0xff]
        %v847 = vld [vmem:[#allocation14 + $0x28] sm:$0xff]
        %v848 = vld [vmem:[#allocation14 + $0x30] sm:$0xff]
        %v849 = vld [vmem:[#allocation14 + $0x38] sm:$0xff]
        %v850 = vld [vmem:[%s439] sm:$0xff]
        %v851 = vld [vmem:[%s439 + $0x8] sm:$0xff]
        %v852 = vld [vmem:[%s439 + $0x10] sm:$0xff]
        %v853 = vld [vmem:[%s439 + $0x18] sm:$0xff]
        %v854 = vld [vmem:[%s439 + $0x20] sm:$0xff]
        %v855 = vld [vmem:[%s439 + $0x28] sm:$0xff]
        %v856 = vld [vmem:[%s439 + $0x30] sm:$0xff]
        %v857 = vld [vmem:[%s439 + $0x38] sm:$0xff]
        %v858 = vld [vmem:[%s439 + $0x40] sm:$0xff]
        %v859 = vld [vmem:[%s439 + $0x48] sm:$0xff]
        %v860 = vld [vmem:[%s439 + $0x50] sm:$0xff]
        %v861 = vld [vmem:[%s439 + $0x58] sm:$0xff]
        %v862 = vld [vmem:[%s439 + $0x60] sm:$0xff]
        %v863 = vld [vmem:[%s439 + $0x68] sm:$0xff]
        %v864 = vld [vmem:[%s439 + $0x70] sm:$0xff]
        %v865 = vld [vmem:[%s439 + $0x78] sm:$0xff]
        %v866 = vunpack.c.l.s8.bf16 %v850
        %v867 = vunpack.c.l.s8.bf16 %v851
        %v868 = vunpack.c.h.s8.bf16 %v850
        %v869 = vunpack.c.h.s8.bf16 %v851
        %v870 = vunpack.c.l.s8.bf16 %v852
        %v871 = vunpack.c.l.s8.bf16 %v853
        %v872 = vunpack.c.h.s8.bf16 %v852
        %v873 = vunpack.c.h.s8.bf16 %v853
        %v874 = vunpack.c.l.s8.bf16 %v854
        %v875 = vunpack.c.l.s8.bf16 %v855
        %v876 = vunpack.c.h.s8.bf16 %v854
        %v877 = vunpack.c.h.s8.bf16 %v855
        %v878 = vunpack.c.l.s8.bf16 %v856
        %v879 = vunpack.c.l.s8.bf16 %v857
        %v880 = vunpack.c.h.s8.bf16 %v856
        %v881 = vunpack.c.h.s8.bf16 %v857
        %v882 = vunpack.c.l.s8.bf16 %v858
        %v883 = vunpack.c.l.s8.bf16 %v859
        %v884 = vunpack.c.h.s8.bf16 %v858
        %v885 = vunpack.c.h.s8.bf16 %v859
        %v886 = vunpack.c.l.s8.bf16 %v860
        %v887 = vunpack.c.l.s8.bf16 %v861
        %v888 = vunpack.c.h.s8.bf16 %v860
        %v889 = vunpack.c.h.s8.bf16 %v861
        %v890 = vunpack.c.l.s8.bf16 %v862
        %v891 = vunpack.c.l.s8.bf16 %v863
        %v892 = vunpack.c.h.s8.bf16 %v862
        %v893 = vunpack.c.h.s8.bf16 %v863
        %v894 = vunpack.c.l.s8.bf16 %v864
        %v895 = vunpack.c.l.s8.bf16 %v865
        %v896 = vunpack.c.h.s8.bf16 %v864
        %v897 = vunpack.c.h.s8.bf16 %v865
        %898 = vmatprep.subr.bf16.mxu0 %v867
        %899 = vmatpush1.bf16.msra.mxu0 %v866
        %900 = vmatprep.subr.bf16.mxu0 %v869
        %901 = vmatpush1.bf16.msra.mxu0 %v868
        %902 = vmatprep.subr.bf16.mxu0 %v871
        %903 = vmatpush1.bf16.msra.mxu0 %v870
        %904 = vmatprep.subr.bf16.mxu0 %v873
        %905 = vmatpush1.bf16.msra.mxu0 %v872
        %906 = vmatprep.subr.bf16.mxu0 %v875
        %907 = vmatpush1.bf16.msra.mxu0 %v874
        %908 = vmatprep.subr.bf16.mxu0 %v877
        %909 = vmatpush1.bf16.msra.mxu0 %v876
        %910 = vmatprep.subr.bf16.mxu0 %v879
        %911 = vmatpush1.bf16.msra.mxu0 %v878
        %912 = vmatprep.subr.bf16.mxu0 %v881
        %913 = vmatpush1.bf16.msra.mxu0 %v880
        %914 = vmatprep.subr.bf16.mxu0 %v883
        %915 = vmatpush1.bf16.msra.mxu0 %v882
        %916 = vmatprep.subr.bf16.mxu0 %v885
        %917 = vmatpush1.bf16.msra.mxu0 %v884
        %918 = vmatprep.subr.bf16.mxu0 %v887
        %919 = vmatpush1.bf16.msra.mxu0 %v886
        %920 = vmatprep.subr.bf16.mxu0 %v889
        %921 = vmatpush1.bf16.msra.mxu0 %v888
        %922 = vmatprep.subr.bf16.mxu0 %v891
        %923 = vmatpush1.bf16.msra.mxu0 %v890
        %924 = vmatprep.subr.bf16.mxu0 %v893
        %925 = vmatpush1.bf16.msra.mxu0 %v892
        %926 = vmatprep.subr.bf16.mxu0 %v895
        %927 = vmatpush1.bf16.msra.mxu0 %v894
        %928 = vmatprep.subr.bf16.mxu0 %v897
        %929 = vmatpush1.bf16.msra.mxu0 %v896
        %930 = vmatprep.mubr.bf16.mxu0 %v839
        %931 = vmatmul.mubr.bf16.gmra.mrb[0].mxu0 %v838
        %v932 = vpop.f32.mrb[0].mxu0
        %v933 = vadd.f32 0.0, %v932
        %v934 = vpop.f32.mrb[0].mxu0
        %v935 = vadd.f32 0.0, %v934
        %v936 = vpop.f32.mrb[0].mxu0
        %v937 = vadd.f32 0.0, %v936
        %v938 = vpop.f32.mrb[0].mxu0
        %v939 = vadd.f32 0.0, %v938
        %940 = vmatprep.mubr.bf16.mxu0 %v841
        %941 = vmatmul.mubr.bf16.gmra.mrb[0].mxu0 %v840
        %v942 = vpop.f32.mrb[0].mxu0
        %v943 = vadd.f32 0.0, %v942
        %v944 = vpop.f32.mrb[0].mxu0
        %v945 = vadd.f32 0.0, %v944
        %v946 = vpop.f32.mrb[0].mxu0
        %v947 = vadd.f32 0.0, %v946
        %v948 = vpop.f32.mrb[0].mxu0
        %v949 = vadd.f32 0.0, %v948
        %950 = vdwg.mxu0
        %v951 = vadd.f32 %v842, %v933
        %v952 = vadd.f32 %v843, %v935
        %v953 = vadd.f32 %v844, %v937
        %v954 = vadd.f32 %v845, %v939
        %v955 = vadd.f32 %v846, %v943
        %v956 = vadd.f32 %v847, %v945
        %v957 = vadd.f32 %v848, %v947
        %v958 = vadd.f32 %v849, %v949
        %959 = vst [vmem:[#allocation14] sm:$0xff] %v951
        %960 = vst [vmem:[#allocation14 + $0x8] sm:$0xff] %v952
        %961 = vst [vmem:[#allocation14 + $0x10] sm:$0xff] %v953
        %962 = vst [vmem:[#allocation14 + $0x18] sm:$0xff] %v954
        %963 = vst [vmem:[#allocation14 + $0x20] sm:$0xff] %v955
        %964 = vst [vmem:[#allocation14 + $0x28] sm:$0xff] %v956
        %965 = vst [vmem:[#allocation14 + $0x30] sm:$0xff] %v957
        %966 = vst [vmem:[#allocation14 + $0x38] sm:$0xff] %v958
        %p967 = scmp.eq.s32.totalorder %s34, 1
        // Predicated region
        $region81: #{tpu_custom_call.1} parent=47 // pred_check
          %p968 = pneg %p967
        $region82: #{tpu_custom_call.1} parent=47 // pred_check_branch
          %970 = sbr.rel (%p968) target = $region84
        $region83: #{tpu_custom_call.1} parent=47 // pred_region
          %v971 = vld [vmem:[#allocation14] sm:$0xff]
          %v972 = vld [vmem:[#allocation14 + $0x8] sm:$0xff]
          %v973 = vld [vmem:[#allocation14 + $0x10] sm:$0xff]
          %v974 = vld [vmem:[#allocation14 + $0x18] sm:$0xff]
          %v975 = vld [vmem:[#allocation14 + $0x20] sm:$0xff]
          %v976 = vld [vmem:[#allocation14 + $0x28] sm:$0xff]
          %v977 = vld [vmem:[#allocation14 + $0x30] sm:$0xff]
          %v978 = vld [vmem:[#allocation14 + $0x38] sm:$0xff]
          %v979 = vld [vmem:[#allocation13] sm:$0x3]
          %v981 = vlaneseq
          %v982 = vshrl.u32 %v981, 7
          %v983 = vsub.s32 0, %v982
          %v984 = vrot.slane %v979, %v983
          %v985 = vlaneseq
          %v986 = vshrl.u32 %v985, 7
          %v987 = vsub.s32 1, %v986
          %v988 = vrot.slane %v979, %v987
          %v991 = vmul.f32 %v971, %v984
          %v992 = vmul.f32 %v972, %v988
          %v993 = vmul.f32 %v973, %v984
          %v994 = vmul.f32 %v974, %v988
          %v995 = vmul.f32 %v975, %v984
          %v996 = vmul.f32 %v976, %v988
          %v997 = vmul.f32 %v977, %v984
          %v998 = vmul.f32 %v978, %v988
          %999 = vst [vmem:[#allocation14] sm:$0xff] %v991
          %1000 = vst [vmem:[#allocation14 + $0x8] sm:$0xff] %v992
          %1001 = vst [vmem:[#allocation14 + $0x10] sm:$0xff] %v993
          %1002 = vst [vmem:[#allocation14 + $0x18] sm:$0xff] %v994
          %1003 = vst [vmem:[#allocation14 + $0x20] sm:$0xff] %v995
          %1004 = vst [vmem:[#allocation14 + $0x28] sm:$0xff] %v996
          %1005 = vst [vmem:[#allocation14 + $0x30] sm:$0xff] %v997
          %1006 = vst [vmem:[#allocation14 + $0x38] sm:$0xff] %v998
        $region84: #{tpu_custom_call.1} parent=47 // pred_fallthru
          _
        // Predicated region
        $region85: #{tpu_custom_call.1} parent=47 // pred_check
          %p1007 = pneg %p236
        $region86: #{tpu_custom_call.1} parent=47 // pred_check_branch
          %1009 = sbr.rel (%p1007) target = $region88
        $region87: #{tpu_custom_call.1} parent=47 // pred_region
          %s1010 = smul.u32 4, %s33
          %s1012 = ssub.s32 1024, 1024
          %1013 = vsyncadd [#allocation4], %s1012
          %s1014 = smul.addr %s1010, 2
          %s1015 = smul.addr %s1014, 128
          %s1016 = scalar_lea.hbm %s7, %s1015
          %s1017 = sshll.u32 [#allocation14], 4
          %s1018 = int_to_ptr.vmem [resolvable:$true] %s1017
          %1023 = dma.vmem_to_hbm [thread:$0]  %s1018, 1024, %s1016, [#allocation4], 256, 256, 16
        $region88: #{tpu_custom_call.1} parent=47 // pred_fallthru
          _
        // Predicated region
        $region89: #{tpu_custom_call.1} parent=47 // pred_check
          %p1024 = pneg %p236
        $region90: #{tpu_custom_call.1} parent=47 // pred_check_branch
          %1026 = sbr.rel (%p1024) target = $region92
        $region91: #{tpu_custom_call.1} parent=47 // pred_region
          %1027 = dma.done [#allocation4], 1024
        $region92: #{tpu_custom_call.1} parent=47 // pred_fallthru
          _
      $region48: #{tpu_custom_call.1} parent=5 // pred_fallthru
        _
      %p1028 = scmp.le.s32.totalorder 2, %s24
      // Predicated region
      $region93: #{tpu_custom_call.1} parent=5 // pred_check
        %p1029 = pneg %p1028
      $region94: #{tpu_custom_call.1} parent=5 // pred_check_branch
        %1031 = sbr.rel (%p1029) target = $region96
      $region95: #{tpu_custom_call.1} parent=5 // pred_region
        %s1032 = ssub.s32 %s24, 2
      $region96: #{tpu_custom_call.1} parent=5 // pred_fallthru
        _
    $region6: #{tpu_custom_call.1} parent=1 // loop_footer
      %s28 = sadd.s32 1, %s24
    $region7: #{tpu_custom_call.1} parent=1 // loop_footer_branch
      %23 = sbr.rel target = $region3
    $region8: #{tpu_custom_call.1} parent=1 // loop_exit
      _
    %1033 = vsyncpa [#allocation3], 1
    %s1034 = scalar_lea.sflag [#allocation3], 1
    %1035 = vsyncpa %s1034, 1
    %1036 = vsyncpa [#allocation6], 1
    %s1037 = scalar_lea.sflag [#allocation6], 1
    %1038 = vsyncpa %s1037, 1
    %1039 = vsyncpa [#allocation9], 1
    %s1040 = scalar_lea.sflag [#allocation9], 1
    %1041 = vsyncpa %s1040, 1
    %1042 = vsyncpa [#allocation12], 1
    %s1043 = scalar_lea.sflag [#allocation12], 1
    %1044 = vsyncpa %s1043, 1
    %1045 = vsyncpa [#allocation4], 1
    %s1046 = scalar_lea.sflag [#allocation4], 1
    %1047 = vsyncpa %s1046, 1

</llo_original>
